<compile_context>
chip_gen: v5e
topology: v5e:2x2
jax: 0.10.0
libtpu: 0.0.40
codegen_flags: <defaults>
</compile_context>

<pallas_src>
import jax
import jax.numpy as jnp
from jax.experimental import pallas as pl
from jax.experimental.pallas import tpu as pltpu

_SUBLANE = 8  # vreg sublane width (second-to-last dim granularity)


def _round_up(x, m):
    return ((x + m - 1) // m) * m


def mlp_kernel(x_ref, w1_ref, b1_ref, w2_ref, b2_ref, w3_ref, b3_ref,
               w4_ref, b4_ref, o_ref):
    cdt = w1_ref.dtype  # compute dtype of matmul operands (bf16 or f32)
    # features: Linear + ReLU (Dropout = identity in eval mode)
    # TODO(synk): training-mode dropout (Bernoulli masks via pltpu.prng_*) not implemented.
    x = x_ref[...].astype(cdt)
    h = jnp.dot(x, w1_ref[...], preferred_element_type=jnp.float32)
    h = jnp.maximum(h + b1_ref[...], 0.0)
    h = jnp.dot(h.astype(cdt), w2_ref[...], preferred_element_type=jnp.float32)
    h = jnp.maximum(h + b2_ref[...], 0.0)
    h = jnp.dot(h.astype(cdt), w3_ref[...], preferred_element_type=jnp.float32)
    h = jnp.maximum(h + b3_ref[...], 0.0)
    # classifier: Linear, stored directly at its true width C (no lane padding in HBM)
    o_ref[...] = (jnp.dot(h.astype(cdt), w4_ref[...],
                          preferred_element_type=jnp.float32)
                  + b4_ref[...]).astype(o_ref.dtype)


def prepare_params(params, *, compute_dtype=jnp.bfloat16):
    """One-time weight preparation: cast weights to the compute dtype, keep biases f32.

    Call once; reuse the result across forward calls (avoids re-casting / extra XLA
    launches on every forward).
    """
    prep = {}
    for i in range(1, 5):
        prep[f"w{i}"] = params[f"w{i}"].astype(compute_dtype)
        prep[f"b{i}"] = params[f"b{i}"].reshape(1, -1).astype(jnp.float32)
    return prep


def dnn_model_forward(x, prep, *, batch_tile=None):
    """x: (B, input_dim) float32.  prep: output of prepare_params()."""
    B, D = x.shape
    C = prep["w4"].shape[1]

    # ---- Batch tile heuristic ------------------------------------------------
    # Tiny B: one grid step (per-step overhead dominates).  Larger B: >= 4 steps
    # (2 per TensorCore on v7x for DMA/compute overlap), capped at 1024 rows so
    # double-buffered x/out tiles + intermediates stay a few MB of VMEM on every
    # generation (v5e 16 MiB default scoped, v7x 64 MiB physical).
    if batch_tile is None:
        if B <= 128:
            batch_tile = _round_up(B, _SUBLANE)
        else:
            batch_tile = min(1024, _round_up(pl.cdiv(B, 4), _SUBLANE))
    batch_tile = max(_SUBLANE, _round_up(batch_tile, _SUBLANE))

    Bp = _round_up(B, batch_tile)
    if Bp != B:  # only pad the (tiny) batch remainder; feature dim stays at D
        x = jnp.pad(x, ((0, Bp - B), (0, 0)))

    grid = (Bp // batch_tile,)

    def const_spec(shape):
        # Whole-array block, same block index every grid step (weights stay resident).
        nd = len(shape)
        return pl.BlockSpec(shape, lambda i: (0,) * nd)

    out = pl.pallas_call(
        mlp_kernel,
        out_shape=jax.ShapeDtypeStruct((Bp, C), jnp.float32),
        grid=grid,
        in_specs=[
            pl.BlockSpec((batch_tile, D), lambda i: (i, 0)),  # x tile (full-extent last dim)
            const_spec(prep["w1"].shape), const_spec(prep["b1"].shape),
            const_spec(prep["w2"].shape), const_spec(prep["b2"].shape),
            const_spec(prep["w3"].shape), const_spec(prep["b3"].shape),
            const_spec(prep["w4"].shape), const_spec(prep["b4"].shape),
        ],
        out_specs=pl.BlockSpec((batch_tile, C), lambda i: (i, 0)),
        compiler_params=pltpu.CompilerParams(
            dimension_semantics=("parallel",),
            vmem_limit_bytes=32 * 1024 * 1024),
    )(x, prep["w1"], prep["b1"], prep["w2"], prep["b2"],
      prep["w3"], prep["b3"], prep["w4"], prep["b4"])

    return out[:B] if Bp != B else out


def init_params(key, input_dim, num_classes):
    """Deterministic init mimicking PyTorch nn.Linear default (uniform +/- 1/sqrt(fan_in))."""
    dims = [(input_dim, 256), (256, 128), (128, 64), (64, num_classes)]
    params = {}
    for idx, (fan_in, fan_out) in enumerate(dims, start=1):
        key, kw, kb = jax.random.split(key, 3)
        bound = 1.0 / jnp.sqrt(jnp.float32(fan_in))
        params[f"w{idx}"] = jax.random.uniform(
            kw, (fan_in, fan_out), jnp.float32, -bound, bound)
        params[f"b{idx}"] = jax.random.uniform(
            kb, (1, fan_out), jnp.float32, -bound, bound)
    return params


def reference_forward(x, params, compute_dtype=jnp.float32):
    """Pure-JAX reference mirroring the kernel's precision (operands in compute_dtype,
    f32 accumulation / bias add / ReLU)."""
    def lin(h, w, b):
        return jnp.dot(h.astype(compute_dtype), w.astype(compute_dtype),
                       preferred_element_type=jnp.float32) + b
    h = jnp.maximum(lin(x, params["w1"], params["b1"]), 0.0)
    h = jnp.maximum(lin(h, params["w2"], params["b2"]), 0.0)
    h = jnp.maximum(lin(h, params["w3"], params["b3"]), 0.0)
    return lin(h, params["w4"], params["b4"])


if __name__ == "__main__":
    num_classes = 10
    input_dim = 32
    batch = 8

    key = jax.random.PRNGKey(0)
    key, kx = jax.random.split(key)
    x = jax.random.normal(kx, (batch, input_dim), dtype=jnp.float32)
    params = init_params(key, input_dim, num_classes)

    # Default bf16-operand / f32-accumulate path (weights prepared once).
    prep_bf16 = prepare_params(params)
    out = jax.block_until_ready(dnn_model_forward(x, prep_bf16))
    ref = reference_forward(x, params, compute_dtype=jnp.bfloat16)
    assert out.shape == (batch, num_classes)
    assert jnp.allclose(out, ref, atol=5e-2, rtol=5e-2), "bf16 mismatch vs reference"

    # Full-f32 path: exact vs reference.
    prep_f32 = prepare_params(params, compute_dtype=jnp.float32)
    out32 = jax.block_until_ready(dnn_model_forward(x, prep_f32))
    ref32 = reference_forward(x, params, compute_dtype=jnp.float32)
    assert jnp.allclose(out32, ref32, atol=1e-4, rtol=1e-4), "f32 mismatch vs reference"

    # Larger batch: multi-step grid (>= 4 steps -> pipelined x/out DMAs, 2 steps per
    # TensorCore on v7x under dimension_semantics=("parallel",)).
    xl = jax.random.normal(jax.random.PRNGKey(1), (512, input_dim), dtype=jnp.float32)
    out_l = jax.block_until_ready(dnn_model_forward(xl, prep_bf16))
    ref_l = reference_forward(xl, params, compute_dtype=jnp.bfloat16)
    assert out_l.shape == (512, num_classes)
    assert jnp.allclose(out_l, ref_l, atol=5e-2, rtol=5e-2), "large-batch mismatch"

    print("KERNEL_OK")
</pallas_src>

<mosaic_0001>
module attributes {stable_mosaic.version = 11 : i64} {
  func.func @mlp_kernel(%arg0: i32, %arg1: memref<8x32xf32, #tpu.memory_space<vmem>>, %arg2: memref<32x256xbf16, #tpu.memory_space<vmem>>, %arg3: memref<1x256xf32, #tpu.memory_space<vmem>>, %arg4: memref<256x128xbf16, #tpu.memory_space<vmem>>, %arg5: memref<1x128xf32, #tpu.memory_space<vmem>>, %arg6: memref<128x64xbf16, #tpu.memory_space<vmem>>, %arg7: memref<1x64xf32, #tpu.memory_space<vmem>>, %arg8: memref<64x10xbf16, #tpu.memory_space<vmem>>, %arg9: memref<1x10xf32, #tpu.memory_space<vmem>>, %arg10: memref<8x10xf32, #tpu.memory_space<vmem>>) attributes {dimension_semantics = [#tpu.dimension_semantics<parallel>], iteration_bounds = array<i64: 1>, scalar_prefetch = 0 : i64, scratch_operands = 0 : i64, tpu.core_type = #tpu.core_type<tc>, window_params = [{transform_indices = @transform_0, window_bounds = array<i64: 8, 32>}, {pipeline_mode = #tpu.pipeline_mode<synchronous>, transform_indices = @transform_1, window_bounds = array<i64: 32, 256>}, {pipeline_mode = #tpu.pipeline_mode<synchronous>, transform_indices = @transform_2, window_bounds = array<i64: 1, 256>}, {pipeline_mode = #tpu.pipeline_mode<synchronous>, transform_indices = @transform_3, window_bounds = array<i64: 256, 128>}, {pipeline_mode = #tpu.pipeline_mode<synchronous>, transform_indices = @transform_4, window_bounds = array<i64: 1, 128>}, {pipeline_mode = #tpu.pipeline_mode<synchronous>, transform_indices = @transform_5, window_bounds = array<i64: 128, 64>}, {pipeline_mode = #tpu.pipeline_mode<synchronous>, transform_indices = @transform_6, window_bounds = array<i64: 1, 64>}, {pipeline_mode = #tpu.pipeline_mode<synchronous>, transform_indices = @transform_7, window_bounds = array<i64: 64, 10>}, {pipeline_mode = #tpu.pipeline_mode<synchronous>, transform_indices = @transform_8, window_bounds = array<i64: 1, 10>}, {transform_indices = @transform_9, window_bounds = array<i64: 8, 10>}]} {
    %c0 = arith.constant 0 : index
    %c0_0 = arith.constant 0 : index
    %0 = vector.load %arg1[%c0, %c0_0] : memref<8x32xf32, #tpu.memory_space<vmem>>, vector<8x32xf32>
    %1 = arith.truncf %0 : vector<8x32xf32> to vector<8x32xbf16>
    %c0_1 = arith.constant 0 : index
    %c0_2 = arith.constant 0 : index
    %2 = vector.load %arg2[%c0_1, %c0_2] : memref<32x256xbf16, #tpu.memory_space<vmem>>, vector<32x256xbf16>
    %cst = arith.constant dense<0.000000e+00> : vector<8x256xf32>
    %3 = tpu.matmul %1, %2, %cst {dimension_numbers = #tpu.dot_dimension_numbers<[1], [0], [0], [1], [0, 0, 1, 1], [], []>} : vector<8x32xbf16>, vector<32x256xbf16>, vector<8x256xf32> -> vector<8x256xf32>
    %c0_3 = arith.constant 0 : index
    %c0_4 = arith.constant 0 : index
    %4 = vector.load %arg3[%c0_3, %c0_4] : memref<1x256xf32, #tpu.memory_space<vmem>>, vector<1x256xf32>
    %5 = vector.broadcast %4 : vector<1x256xf32> to vector<8x256xf32>
    %6 = arith.addf %3, %5 : vector<8x256xf32>
    %cst_5 = arith.constant 0.000000e+00 : f32
    %7 = vector.broadcast %cst_5 : f32 to vector<8x256xf32>
    %8 = arith.maximumf %6, %7 : vector<8x256xf32>
    %9 = arith.truncf %8 : vector<8x256xf32> to vector<8x256xbf16>
    %c0_6 = arith.constant 0 : index
    %c0_7 = arith.constant 0 : index
    %10 = vector.load %arg4[%c0_6, %c0_7] : memref<256x128xbf16, #tpu.memory_space<vmem>>, vector<256x128xbf16>
    %cst_8 = arith.constant dense<0.000000e+00> : vector<8x128xf32>
    %11 = tpu.matmul %9, %10, %cst_8 {dimension_numbers = #tpu.dot_dimension_numbers<[1], [0], [0], [1], [0, 0, 1, 1], [], []>} : vector<8x256xbf16>, vector<256x128xbf16>, vector<8x128xf32> -> vector<8x128xf32>
    %c0_9 = arith.constant 0 : index
    %c0_10 = arith.constant 0 : index
    %12 = vector.load %arg5[%c0_9, %c0_10] : memref<1x128xf32, #tpu.memory_space<vmem>>, vector<1x128xf32>
    %13 = vector.broadcast %12 : vector<1x128xf32> to vector<8x128xf32>
    %14 = arith.addf %11, %13 : vector<8x128xf32>
    %cst_11 = arith.constant 0.000000e+00 : f32
    %15 = vector.broadcast %cst_11 : f32 to vector<8x128xf32>
    %16 = arith.maximumf %14, %15 : vector<8x128xf32>
    %17 = arith.truncf %16 : vector<8x128xf32> to vector<8x128xbf16>
    %c0_12 = arith.constant 0 : index
    %c0_13 = arith.constant 0 : index
    %18 = vector.load %arg6[%c0_12, %c0_13] : memref<128x64xbf16, #tpu.memory_space<vmem>>, vector<128x64xbf16>
    %cst_14 = arith.constant dense<0.000000e+00> : vector<8x64xf32>
    %19 = tpu.matmul %17, %18, %cst_14 {dimension_numbers = #tpu.dot_dimension_numbers<[1], [0], [0], [1], [0, 0, 1, 1], [], []>} : vector<8x128xbf16>, vector<128x64xbf16>, vector<8x64xf32> -> vector<8x64xf32>
    %c0_15 = arith.constant 0 : index
    %c0_16 = arith.constant 0 : index
    %20 = vector.load %arg7[%c0_15, %c0_16] : memref<1x64xf32, #tpu.memory_space<vmem>>, vector<1x64xf32>
    %21 = vector.broadcast %20 : vector<1x64xf32> to vector<8x64xf32>
    %22 = arith.addf %19, %21 : vector<8x64xf32>
    %cst_17 = arith.constant 0.000000e+00 : f32
    %23 = vector.broadcast %cst_17 : f32 to vector<8x64xf32>
    %24 = arith.maximumf %22, %23 : vector<8x64xf32>
    %25 = arith.truncf %24 : vector<8x64xf32> to vector<8x64xbf16>
    %c0_18 = arith.constant 0 : index
    %c0_19 = arith.constant 0 : index
    %26 = vector.load %arg8[%c0_18, %c0_19] : memref<64x10xbf16, #tpu.memory_space<vmem>>, vector<64x10xbf16>
    %cst_20 = arith.constant dense<0.000000e+00> : vector<8x10xf32>
    %27 = tpu.matmul %25, %26, %cst_20 {dimension_numbers = #tpu.dot_dimension_numbers<[1], [0], [0], [1], [0, 0, 1, 1], [], []>} : vector<8x64xbf16>, vector<64x10xbf16>, vector<8x10xf32> -> vector<8x10xf32>
    %c0_21 = arith.constant 0 : index
    %c0_22 = arith.constant 0 : index
    %28 = vector.load %arg9[%c0_21, %c0_22] : memref<1x10xf32, #tpu.memory_space<vmem>>, vector<1x10xf32>
    %29 = vector.broadcast %28 : vector<1x10xf32> to vector<8x10xf32>
    %30 = arith.addf %27, %29 : vector<8x10xf32>
    %c0_23 = arith.constant 0 : index
    %c0_24 = arith.constant 0 : index
    %31 = vector.load %arg10[%c0_23, %c0_24] : memref<8x10xf32, #tpu.memory_space<vmem>>, vector<8x10xf32>
    tpu.vector_store %arg10[%c0_23, %c0_24], %30 {strides = array<i32>} : memref<8x10xf32, #tpu.memory_space<vmem>>, vector<8x10xf32>,
    return
  }
  func.func @transform_0(%arg0: i32) -> (i32, i32) {
    %c0_i32 = arith.constant 0 : i32
    %c0_i32_0 = arith.constant 0 : i32
    return %arg0, %c0_i32 : i32, i32
  }
  func.func @transform_1(%arg0: i32) -> (i32, i32) {
    %c0_i32 = arith.constant 0 : i32
    %c0_i32_0 = arith.constant 0 : i32
    %c0_i32_1 = arith.constant 0 : i32
    return %c0_i32, %c0_i32_0 : i32, i32
  }
  func.func @transform_2(%arg0: i32) -> (i32, i32) {
    %c0_i32 = arith.constant 0 : i32
    %c0_i32_0 = arith.constant 0 : i32
    %c0_i32_1 = arith.constant 0 : i32
    return %c0_i32, %c0_i32_0 : i32, i32
  }
  func.func @transform_3(%arg0: i32) -> (i32, i32) {
    %c0_i32 = arith.constant 0 : i32
    %c0_i32_0 = arith.constant 0 : i32
    %c0_i32_1 = arith.constant 0 : i32
    return %c0_i32, %c0_i32_0 : i32, i32
  }
  func.func @transform_4(%arg0: i32) -> (i32, i32) {
    %c0_i32 = arith.constant 0 : i32
    %c0_i32_0 = arith.constant 0 : i32
    %c0_i32_1 = arith.constant 0 : i32
    return %c0_i32, %c0_i32_0 : i32, i32
  }
  func.func @transform_5(%arg0: i32) -> (i32, i32) {
    %c0_i32 = arith.constant 0 : i32
    %c0_i32_0 = arith.constant 0 : i32
    %c0_i32_1 = arith.constant 0 : i32
    return %c0_i32, %c0_i32_0 : i32, i32
  }
  func.func @transform_6(%arg0: i32) -> (i32, i32) {
    %c0_i32 = arith.constant 0 : i32
    %c0_i32_0 = arith.constant 0 : i32
    %c0_i32_1 = arith.constant 0 : i32
    return %c0_i32, %c0_i32_0 : i32, i32
  }
  func.func @transform_7(%arg0: i32) -> (i32, i32) {
    %c0_i32 = arith.constant 0 : i32
    %c0_i32_0 = arith.constant 0 : i32
    %c0_i32_1 = arith.constant 0 : i32
    return %c0_i32, %c0_i32_0 : i32, i32
  }
  func.func @transform_8(%arg0: i32) -> (i32, i32) {
    %c0_i32 = arith.constant 0 : i32
    %c0_i32_0 = arith.constant 0 : i32
    %c0_i32_1 = arith.constant 0 : i32
    return %c0_i32, %c0_i32_0 : i32, i32
  }
  func.func @transform_9(%arg0: i32) -> (i32, i32) {
    %c0_i32 = arith.constant 0 : i32
    %c0_i32_0 = arith.constant 0 : i32
    return %arg0, %c0_i32 : i32, i32
  }
}

</mosaic_0001>

<llo_original>
// kernel: tpu_custom_call.1
$region0: #{tpu_custom_call.1}
  #allocation0 [shape = 'u32[]', space=smem, size = 0x4, offset = 0x4, fixed_abs, tag = 'smem constant byte address 0x4 - core index']
  #allocation1 [shape = 'u32[72,128]{1,0:T(1,128)}', space=vmem, size = 0x9000, scoped, tag = 'internal scratch']
  %s0 = inlined_call_operand.vmem [shape: f32[8,32], index: 0, kind: input, shape index: {}]
  %s1 = inlined_call_operand.vmem [shape: bf16[32,256], index: 1, kind: input, shape index: {}]
  %s2 = inlined_call_operand.vmem [shape: f32[1,256], index: 2, kind: input, shape index: {}]
  %s3 = inlined_call_operand.hbm [shape: bf16[256,128], index: 3, kind: input, shape index: {}]
  %s4 = inlined_call_operand.vmem [shape: f32[1,128], index: 4, kind: input, shape index: {}]
  %s5 = inlined_call_operand.vmem [shape: bf16[128,64], index: 5, kind: input, shape index: {}]
  %s6 = inlined_call_operand.vmem [shape: f32[1,64], index: 6, kind: input, shape index: {}]
  %s7 = inlined_call_operand.vmem [shape: bf16[64,10], index: 7, kind: input, shape index: {}]
  %s8 = inlined_call_operand.vmem [shape: f32[1,10], index: 8, kind: input, shape index: {}]
  %s9 = inlined_call_operand.hbm [shape: f32[8,10], index: 9, kind: output, shape index: {}]
  %s10 = sld [smem:[#allocation0]]
  $region50: #{tpu_custom_call.1} parent=0
    _
  %s12 = ssub.s32 1, %s10
  %s13 = scalar_select 0, %s12, %s10
  $region1: #{tpu_custom_call.1} parent=0
    #allocation2 [shape = 'u8[65536]{0}', space=vmem, size = 0x10000, scoped, tag = 'input window, operand 3, single buffered']
    #allocation3 [shape = 's32[1]{0}', space=sflag, size = 0x4, scoped, tag = 'scoped memory for tpu_custom_call.1']
    #allocation4 [shape = 's32[1]{0}', space=sflag, size = 0x4, scoped, tag = 'scoped memory for tpu_custom_call.1']
    #allocation5 [shape = 'u8[4096]{0}', space=vmem, size = 0x1000, scoped, tag = 'output window, operand 0, single buffered']
    %14 = vsyncpa [#allocation3], 0
    %15 = vsyncpa [#allocation4], 0
    // Predicated region
    $region2: #{tpu_custom_call.1} parent=1 // pred_check
      _
    $region3: #{tpu_custom_call.1} parent=1 // pred_check_branch
      %17 = sbr.rel (0) target = $region5
    $region4: #{tpu_custom_call.1} parent=1 // pred_region
      _
    $region5: #{tpu_custom_call.1} parent=1 // pred_fallthru
      _
    // Predicated region
    $region6: #{tpu_custom_call.1} parent=1 // pred_check
      _
    $region7: #{tpu_custom_call.1} parent=1 // pred_check_branch
      %19 = sbr.rel (0) target = $region9
    $region8: #{tpu_custom_call.1} parent=1 // pred_region
      _
    $region9: #{tpu_custom_call.1} parent=1 // pred_fallthru
      _
    // Predicated region
    $region10: #{tpu_custom_call.1} parent=1 // pred_check
      _
    $region11: #{tpu_custom_call.1} parent=1 // pred_check_branch
      %21 = sbr.rel (0) target = $region13
    $region12: #{tpu_custom_call.1} parent=1 // pred_region
      _
    $region13: #{tpu_custom_call.1} parent=1 // pred_fallthru
      _
    // Predicated region
    $region14: #{tpu_custom_call.1} parent=1 // pred_check
      _
    $region15: #{tpu_custom_call.1} parent=1 // pred_check_branch
      %23 = sbr.rel (0) target = $region17
    $region16: #{tpu_custom_call.1} parent=1 // pred_region
      %25 = vsyncadd [#allocation3], 0
      %s26 = sshll.u32 %s3, 4
      %s27 = int_to_ptr.hbm [resolvable:$true] %s26
      %s28 = sshll.u32 [#allocation2], 4
      %s29 = int_to_ptr.vmem [resolvable:$true] %s28
      %34 = dma.hbm_to_vmem [thread:$0]  %s27, 2048, %s29, [#allocation3], 64, 64, 4
    $region17: #{tpu_custom_call.1} parent=1 // pred_fallthru
      _
    // Predicated region
    $region18: #{tpu_custom_call.1} parent=1 // pred_check
      _
    $region19: #{tpu_custom_call.1} parent=1 // pred_check_branch
      %36 = sbr.rel (0) target = $region21
    $region20: #{tpu_custom_call.1} parent=1 // pred_region
      _
    $region21: #{tpu_custom_call.1} parent=1 // pred_fallthru
      _
    // Predicated region
    $region22: #{tpu_custom_call.1} parent=1 // pred_check
      _
    $region23: #{tpu_custom_call.1} parent=1 // pred_check_branch
      %38 = sbr.rel (0) target = $region25
    $region24: #{tpu_custom_call.1} parent=1 // pred_region
      _
    $region25: #{tpu_custom_call.1} parent=1 // pred_fallthru
      _
    // Predicated region
    $region26: #{tpu_custom_call.1} parent=1 // pred_check
      _
    $region27: #{tpu_custom_call.1} parent=1 // pred_check_branch
      %40 = sbr.rel (0) target = $region29
    $region28: #{tpu_custom_call.1} parent=1 // pred_region
      _
    $region29: #{tpu_custom_call.1} parent=1 // pred_fallthru
      _
    // Predicated region
    $region30: #{tpu_custom_call.1} parent=1 // pred_check
      _
    $region31: #{tpu_custom_call.1} parent=1 // pred_check_branch
      %42 = sbr.rel (0) target = $region33
    $region32: #{tpu_custom_call.1} parent=1 // pred_region
      _
    $region33: #{tpu_custom_call.1} parent=1 // pred_fallthru
      _
    // Predicated region
    $region34: #{tpu_custom_call.1} parent=1 // pred_check
      _
    $region35: #{tpu_custom_call.1} parent=1 // pred_check_branch
      %44 = sbr.rel (0) target = $region37
    $region36: #{tpu_custom_call.1} parent=1 // pred_region
      _
    $region37: #{tpu_custom_call.1} parent=1 // pred_fallthru
      _
    // Predicated region
    $region38: #{tpu_custom_call.1} parent=1 // pred_check
      _
    $region39: #{tpu_custom_call.1} parent=1 // pred_check_branch
      %46 = sbr.rel (0) target = $region41
    $region40: #{tpu_custom_call.1} parent=1 // pred_region
      %48 = dma.done [#allocation3], 2048
    $region41: #{tpu_custom_call.1} parent=1 // pred_fallthru
      _
    %v50 = vld [vmem:[%s0] sm:$0xff]
    %v51 = vpack.c.bf16 %v50, %v50
    %v52 = vld [vmem:[%s1] sm:$0xff]
    %v53 = vld [vmem:[%s1 + $0x8] sm:$0xff]
    %v54 = vld [vmem:[%s1 + $0x10] sm:$0xff]
    %v55 = vld [vmem:[%s1 + $0x18] sm:$0xff]
    %v56 = vld [vmem:[%s2] sm:$0x3]
    %v58 = vperm.slane %v56, 0
    %v59 = vperm.slane %v56, 1
    %v66 = vunpack.c.l.b16 %v52
    %v67 = vunpack.c.h.b16 %v52
    %v68 = vunpack.c.l.b16 %v53
    %v69 = vunpack.c.h.b16 %v53
    %v70 = vunpack.c.l.b16 %v54
    %v71 = vunpack.c.h.b16 %v54
    %v72 = vunpack.c.l.b16 %v55
    %v73 = vunpack.c.h.b16 %v55
    %v74 = vpack.c.b16 %v68, %v66
    %v75 = vpack.c.b16 %v69, %v67
    %v76 = vpack.c.b16 %v72, %v70
    %v77 = vpack.c.b16 %v73, %v71
    %vm82 = vcmask 261120
    %v84 = vsel %vm82, %v51, 0
    %86 = vmatpush.bf16.msra.mxu0 0
    %87 = vmatpush.bf16.msra.mxu0 0
    %88 = vmatpush.bf16.msra.mxu0 0
    %89 = vmatpush.bf16.msra.mxu0 0
    %90 = vmatpush.bf16.msra.mxu0 0
    %91 = vmatpush.bf16.msra.mxu0 0
    %92 = vmatpush.bf16.msra.mxu0 %v76
    %93 = vmatpush.bf16.msra.mxu0 %v74
    %94 = vmatmul.bf16.gmra.mxu0 %v84
    %v95 = vpop.f32.mrf.mxu0
    %v96 = vadd.f32 %v58, %v95
    %v97 = vpop.f32.mrf.mxu0
    %98 = vdwg.mxu0
    %99 = vmatpush.bf16.msra.mxu0 0
    %100 = vmatpush.bf16.msra.mxu0 0
    %101 = vmatpush.bf16.msra.mxu0 0
    %102 = vmatpush.bf16.msra.mxu0 0
    %103 = vmatpush.bf16.msra.mxu0 0
    %104 = vmatpush.bf16.msra.mxu0 0
    %105 = vmatpush.bf16.msra.mxu0 %v77
    %106 = vmatpush.bf16.msra.mxu0 %v75
    %107 = vmatmul.bf16.gmra.mxu0 %v84
    %v108 = vpop.f32.mrf.mxu0
    %v109 = vadd.f32 %v59, %v108
    %v110 = vpop.f32.mrf.mxu0
    %111 = vdwg.mxu0
    %v112 = vmax.f32 %v96, 0.0
    %v113 = vmax.f32 %v109, 0.0
    %v114 = vpack.c.bf16 %v112, %v112
    %v115 = vpack.c.bf16 %v113, %v113
    %v116 = vld [vmem:[#allocation2] sm:$0xf]
    %v117 = vld [vmem:[#allocation2 + $0x4] sm:$0xf]
    %v118 = vld [vmem:[#allocation2 + $0x8] sm:$0xf]
    %v119 = vld [vmem:[#allocation2 + $0xc] sm:$0xf]
    %v120 = vld [vmem:[#allocation2 + $0x10] sm:$0xf]
    %v121 = vld [vmem:[#allocation2 + $0x14] sm:$0xf]
    %v122 = vld [vmem:[#allocation2 + $0x18] sm:$0xf]
    %v123 = vld [vmem:[#allocation2 + $0x1c] sm:$0xf]
    %v124 = vld [vmem:[#allocation2 + $0x20] sm:$0xf]
    %v125 = vld [vmem:[#allocation2 + $0x24] sm:$0xf]
    %v126 = vld [vmem:[#allocation2 + $0x28] sm:$0xf]
    %v127 = vld [vmem:[#allocation2 + $0x2c] sm:$0xf]
    %v128 = vld [vmem:[#allocation2 + $0x30] sm:$0xf]
    %v129 = vld [vmem:[#allocation2 + $0x34] sm:$0xf]
    %v130 = vld [vmem:[#allocation2 + $0x38] sm:$0xf]
    %v131 = vld [vmem:[#allocation2 + $0x3c] sm:$0xf]
    %v132 = vld [vmem:[#allocation2 + $0x40] sm:$0xf]
    %v133 = vld [vmem:[#allocation2 + $0x44] sm:$0xf]
    %v134 = vld [vmem:[#allocation2 + $0x48] sm:$0xf]
    %v135 = vld [vmem:[#allocation2 + $0x4c] sm:$0xf]
    %v136 = vld [vmem:[#allocation2 + $0x50] sm:$0xf]
    %v137 = vld [vmem:[#allocation2 + $0x54] sm:$0xf]
    %v138 = vld [vmem:[#allocation2 + $0x58] sm:$0xf]
    %v139 = vld [vmem:[#allocation2 + $0x5c] sm:$0xf]
    %v140 = vld [vmem:[#allocation2 + $0x60] sm:$0xf]
    %v141 = vld [vmem:[#allocation2 + $0x64] sm:$0xf]
    %v142 = vld [vmem:[#allocation2 + $0x68] sm:$0xf]
    %v143 = vld [vmem:[#allocation2 + $0x6c] sm:$0xf]
    %v144 = vld [vmem:[#allocation2 + $0x70] sm:$0xf]
    %v145 = vld [vmem:[#allocation2 + $0x74] sm:$0xf]
    %v146 = vld [vmem:[#allocation2 + $0x78] sm:$0xf]
    %v147 = vld [vmem:[#allocation2 + $0x7c] sm:$0xf]
    %v148 = vld [vmem:[%s4] sm:$0x1]
    %v150 = vperm.slane %v148, 0
    %v184 = vunpack.c.l.b16 %v116
    %v185 = vunpack.c.l.b16 %v117
    %v186 = vunpack.c.l.b16 %v118
    %v187 = vunpack.c.l.b16 %v119
    %v188 = vunpack.c.l.b16 %v120
    %v189 = vunpack.c.l.b16 %v121
    %v190 = vunpack.c.l.b16 %v122
    %v191 = vunpack.c.l.b16 %v123
    %v192 = vunpack.c.l.b16 %v124
    %v193 = vunpack.c.l.b16 %v125
    %v194 = vunpack.c.l.b16 %v126
    %v195 = vunpack.c.l.b16 %v127
    %v196 = vunpack.c.l.b16 %v128
    %v197 = vunpack.c.l.b16 %v129
    %v198 = vunpack.c.l.b16 %v130
    %v199 = vunpack.c.l.b16 %v131
    %v200 = vunpack.c.l.b16 %v132
    %v201 = vunpack.c.l.b16 %v133
    %v202 = vunpack.c.l.b16 %v134
    %v203 = vunpack.c.l.b16 %v135
    %v204 = vunpack.c.l.b16 %v136
    %v205 = vunpack.c.l.b16 %v137
    %v206 = vunpack.c.l.b16 %v138
    %v207 = vunpack.c.l.b16 %v139
    %v208 = vunpack.c.l.b16 %v140
    %v209 = vunpack.c.l.b16 %v141
    %v210 = vunpack.c.l.b16 %v142
    %v211 = vunpack.c.l.b16 %v143
    %v212 = vunpack.c.l.b16 %v144
    %v213 = vunpack.c.l.b16 %v145
    %v214 = vunpack.c.l.b16 %v146
    %v215 = vunpack.c.l.b16 %v147
    %v216 = vpack.c.b16 %v185, %v184
    %v217 = vpack.c.b16 %v187, %v186
    %v218 = vpack.c.b16 %v189, %v188
    %v219 = vpack.c.b16 %v191, %v190
    %v220 = vpack.c.b16 %v193, %v192
    %v221 = vpack.c.b16 %v195, %v194
    %v222 = vpack.c.b16 %v197, %v196
    %v223 = vpack.c.b16 %v199, %v198
    %v224 = vpack.c.b16 %v201, %v200
    %v225 = vpack.c.b16 %v203, %v202
    %v226 = vpack.c.b16 %v205, %v204
    %v227 = vpack.c.b16 %v207, %v206
    %v228 = vpack.c.b16 %v209, %v208
    %v229 = vpack.c.b16 %v211, %v210
    %v230 = vpack.c.b16 %v213, %v212
    %v231 = vpack.c.b16 %v215, %v214
    %248 = vmatpush.bf16.msra.mxu0 %v223
    %249 = vmatpush.bf16.msra.mxu0 %v222
    %250 = vmatpush.bf16.msra.mxu0 %v221
    %251 = vmatpush.bf16.msra.mxu0 %v220
    %252 = vmatpush.bf16.msra.mxu0 %v219
    %253 = vmatpush.bf16.msra.mxu0 %v218
    %254 = vmatpush.bf16.msra.mxu0 %v217
    %255 = vmatpush.bf16.msra.mxu0 %v216
    %256 = vmatmul.bf16.gmra.mxu0 %v114
    %v257 = vpop.f32.mrf.mxu0
    %v258 = vadd.f32 %v150, %v257
    %v259 = vpop.f32.mrf.mxu0
    %260 = vdwg.mxu0
    %261 = vmatpush.bf16.msra.mxu0 %v231
    %262 = vmatpush.bf16.msra.mxu0 %v230
    %263 = vmatpush.bf16.msra.mxu0 %v229
    %264 = vmatpush.bf16.msra.mxu0 %v228
    %265 = vmatpush.bf16.msra.mxu0 %v227
    %266 = vmatpush.bf16.msra.mxu0 %v226
    %267 = vmatpush.bf16.msra.mxu0 %v225
    %268 = vmatpush.bf16.msra.mxu0 %v224
    %269 = vmatmul.bf16.gmra.mxu0 %v115
    %v270 = vpop.f32.mrf.mxu0
    %v271 = vadd.f32 %v258, %v270
    %v272 = vpop.f32.mrf.mxu0
    %273 = vdwg.mxu0
    %v274 = vmax.f32 %v271, 0.0
    %v275 = vpack.c.bf16 %v274, %v274
    %v276 = vld [vmem:[%s5] sm:$0xf]
    %v277 = vld [vmem:[%s5 + $0x4] sm:$0xf]
    %v278 = vld [vmem:[%s5 + $0x8] sm:$0xf]
    %v279 = vld [vmem:[%s5 + $0xc] sm:$0xf]
    %v280 = vld [vmem:[%s5 + $0x10] sm:$0xf]
    %v281 = vld [vmem:[%s5 + $0x14] sm:$0xf]
    %v282 = vld [vmem:[%s5 + $0x18] sm:$0xf]
    %v283 = vld [vmem:[%s5 + $0x1c] sm:$0xf]
    %v284 = vld [vmem:[%s5 + $0x20] sm:$0xf]
    %v285 = vld [vmem:[%s5 + $0x24] sm:$0xf]
    %v286 = vld [vmem:[%s5 + $0x28] sm:$0xf]
    %v287 = vld [vmem:[%s5 + $0x2c] sm:$0xf]
    %v288 = vld [vmem:[%s5 + $0x30] sm:$0xf]
    %v289 = vld [vmem:[%s5 + $0x34] sm:$0xf]
    %v290 = vld [vmem:[%s5 + $0x38] sm:$0xf]
    %v291 = vld [vmem:[%s5 + $0x3c] sm:$0xf]
    %v292 = vld [vmem:[%s6] sm:$0x1]
    %v294 = vperm.slane %v292, 0
    %v312 = vunpack.c.l.b16 %v276
    %v313 = vunpack.c.l.b16 %v277
    %v314 = vunpack.c.l.b16 %v278
    %v315 = vunpack.c.l.b16 %v279
    %v316 = vunpack.c.l.b16 %v280
    %v317 = vunpack.c.l.b16 %v281
    %v318 = vunpack.c.l.b16 %v282
    %v319 = vunpack.c.l.b16 %v283
    %v320 = vunpack.c.l.b16 %v284
    %v321 = vunpack.c.l.b16 %v285
    %v322 = vunpack.c.l.b16 %v286
    %v323 = vunpack.c.l.b16 %v287
    %v324 = vunpack.c.l.b16 %v288
    %v325 = vunpack.c.l.b16 %v289
    %v326 = vunpack.c.l.b16 %v290
    %v327 = vunpack.c.l.b16 %v291
    %v328 = vpack.c.b16 %v313, %v312
    %v329 = vpack.c.b16 %v315, %v314
    %v330 = vpack.c.b16 %v317, %v316
    %v331 = vpack.c.b16 %v319, %v318
    %v332 = vpack.c.b16 %v321, %v320
    %v333 = vpack.c.b16 %v323, %v322
    %v334 = vpack.c.b16 %v325, %v324
    %v335 = vpack.c.b16 %v327, %v326
    %344 = vmatpush.bf16.msra.mxu0 %v335
    %345 = vmatpush.bf16.msra.mxu0 %v334
    %346 = vmatpush.bf16.msra.mxu0 %v333
    %347 = vmatpush.bf16.msra.mxu0 %v332
    %348 = vmatpush.bf16.msra.mxu0 %v331
    %349 = vmatpush.bf16.msra.mxu0 %v330
    %350 = vmatpush.bf16.msra.mxu0 %v329
    %351 = vmatpush.bf16.msra.mxu0 %v328
    %352 = vmatmul.bf16.gmra.mxu0 %v275
    %v353 = vpop.f32.mrf.mxu0
    %v354 = vadd.f32 %v294, %v353
    %v355 = vpop.f32.mrf.mxu0
    %356 = vdwg.mxu0
    %v357 = vmax.f32 %v354, 0.0
    %v358 = vpack.c.bf16 %v357, %v357
    %v359 = vld [vmem:[%s7] sm:$0xf]
    %v360 = vld [vmem:[%s7 + $0x4] sm:$0xf]
    %v361 = vld [vmem:[%s7 + $0x8] sm:$0xf]
    %v362 = vld [vmem:[%s7 + $0xc] sm:$0xf]
    %v363 = vld [vmem:[%s7 + $0x10] sm:$0xf]
    %v364 = vld [vmem:[%s7 + $0x14] sm:$0xf]
    %v365 = vld [vmem:[%s7 + $0x18] sm:$0xf]
    %v366 = vld [vmem:[%s7 + $0x1c] sm:$0xf]
    %v367 = vld [vmem:[%s8] sm:$0x1]
    %v369 = vperm.slane %v367, 0
    %v379 = vunpack.c.l.b16 %v359
    %v380 = vunpack.c.l.b16 %v360
    %v381 = vunpack.c.l.b16 %v361
    %v382 = vunpack.c.l.b16 %v362
    %v383 = vunpack.c.l.b16 %v363
    %v384 = vunpack.c.l.b16 %v364
    %v385 = vunpack.c.l.b16 %v365
    %v386 = vunpack.c.l.b16 %v366
    %v387 = vpack.c.b16 %v380, %v379
    %v388 = vpack.c.b16 %v382, %v381
    %v389 = vpack.c.b16 %v384, %v383
    %v390 = vpack.c.b16 %v386, %v385
    %vm395 = vcmask 523264
    %v397 = vsel %vm395, %v358, 0
    %399 = vmatpush.bf16.msra.mxu0 0
    %400 = vmatpush.bf16.msra.mxu0 0
    %401 = vmatpush.bf16.msra.mxu0 0
    %402 = vmatpush.bf16.msra.mxu0 0
    %403 = vmatpush.bf16.msra.mxu0 %v390
    %404 = vmatpush.bf16.msra.mxu0 %v389
    %405 = vmatpush.bf16.msra.mxu0 %v388
    %406 = vmatpush.bf16.msra.mxu0 %v387
    %407 = vmatmul.bf16.gmra.mxu0 %v397
    %v408 = vpop.f32.mrf.mxu0
    %v409 = vadd.f32 %v369, %v408
    %v410 = vpop.f32.mrf.mxu0
    %411 = vdwg.mxu0
    %vm412 = vcmask 80896
    %413 = vst.msk [vmem:[#allocation5] sm:$0xff] %vm412, %v409
    // Predicated region
    $region42: #{tpu_custom_call.1} parent=1 // pred_check
      _
    $region43: #{tpu_custom_call.1} parent=1 // pred_check_branch
      %415 = sbr.rel (0) target = $region45
    $region44: #{tpu_custom_call.1} parent=1 // pred_region
      %417 = vsyncadd [#allocation4], 0
      %s419 = sshll.u32 [#allocation5], 4
      %s420 = int_to_ptr.vmem [resolvable:$true] %s419
      %s421 = sshll.u32 %s9, 4
      %s422 = int_to_ptr.hbm [resolvable:$true] %s421
      %424 = dma.vmem_to_hbm [thread:$0]  %s420, 128, %s422, [#allocation4]
    $region45: #{tpu_custom_call.1} parent=1 // pred_fallthru
      _
    // Predicated region
    $region46: #{tpu_custom_call.1} parent=1 // pred_check
      _
    $region47: #{tpu_custom_call.1} parent=1 // pred_check_branch
      %426 = sbr.rel (0) target = $region49
    $region48: #{tpu_custom_call.1} parent=1 // pred_region
      %428 = dma.done [#allocation4], 128
    $region49: #{tpu_custom_call.1} parent=1 // pred_fallthru
      _
    %429 = vsyncpa [#allocation3], 1
    %430 = vsyncpa [#allocation4], 1

</llo_original>
